<compile_context>
chip_gen: v5e
topology: v5e:2x2
jax: 0.10.0
libtpu: 0.0.40
codegen_flags: <defaults>
</compile_context>

<pallas_src>
import functools

import numpy as np

import jax
import jax.numpy as jnp
from jax import lax
from jax.experimental import pallas as pl
from jax.experimental.pallas import tpu as pltpu


def _conv3x3_band_matrices(w_hwio, W):
    """Host-side: per-dy block-Toeplitz matrices for a 3x3 'SAME' conv.

    M[dy] has shape ((W+2)*Cin, W*Cout) with
        M[dy, (x+dx)*Cin + ci, x*Cout + co] = w[dy, dx, ci, co]
    so that for a row-flattened, zero-padded NHWC input
        out[h, x*Cout + co] = sum_dy  xpad_flat[h+dy, :] @ M[dy]
    reproduces the 3x3 convolution exactly.
    """
    w = np.asarray(w_hwio, np.float32)
    kh, kw, cin, cout = w.shape
    M = np.zeros((kh, (W + 2) * cin, W * cout), np.float32)
    for dy in range(kh):
        for dx in range(kw):
            for xc in range(W):
                M[dy,
                  (xc + dx) * cin:(xc + dx + 1) * cin,
                  xc * cout:(xc + 1) * cout] = w[dy, dx]
    return jnp.asarray(M)


def _fused_encoder_kernel(H, W, Cin, Chid, Cout,
                          x_ref, m1_ref, b1_ref, m2_ref, b2_ref, o_ref,
                          xpad_ref, hpad_ref):
    """One batch element: conv3x3+bias+ReLU twice, hidden kept in VMEM.

    x_ref:    (1, H, W*Cin)            row-flattened NHWC input tile
    m1_ref:   (3, (W+2)*Cin, W*Chid)   layer-1 band matrices
    b1_ref:   (1, W*Chid)              layer-1 bias tiled along W
    m2_ref:   (3, (W+2)*Chid, W*Cout)  layer-2 band matrices
    b2_ref:   (1, W*Cout)              layer-2 bias tiled along W
    o_ref:    (1, H, W*Cout)           row-flattened NHWC output tile
    xpad_ref: (H+2, (W+2)*Cin)   VMEM scratch, zero-padded layer-1 input
    hpad_ref: (H+2, (W+2)*Chid)  VMEM scratch, zero-padded hidden activation
    """
    f32 = jnp.float32

    # ---- layer 1: zero halo + interior copy in VMEM, 3 banded matmuls ----
    xpad_ref[...] = jnp.zeros_like(xpad_ref)
    xpad_ref[1:H + 1, Cin:(W + 1) * Cin] = x_ref[0].astype(f32)
    acc1 = jnp.zeros((H, W * Chid), f32)
    for dy in range(3):                      # static unroll
        acc1 = acc1 + jnp.dot(xpad_ref[dy:dy + H, :], m1_ref[dy],
                              preferred_element_type=f32)
    hidden = jnp.maximum(acc1 + b1_ref[...], 0.0)        # (H, W*Chid)

    # ---- layer 2: hidden never leaves VMEM ----
    hpad_ref[...] = jnp.zeros_like(hpad_ref)
    hpad_ref[1:H + 1, Chid:(W + 1) * Chid] = hidden
    acc2 = jnp.zeros((H, W * Cout), f32)
    for dy in range(3):
        acc2 = acc2 + jnp.dot(hpad_ref[dy:dy + H, :], m2_ref[dy],
                              preferred_element_type=f32)
    o_ref[0] = jnp.maximum(acc2 + b2_ref[...], 0.0).astype(o_ref.dtype)


@jax.jit
def _encoder_forward(x_nchw, m1, b1f, m2, b2f):
    N, Cin, H, W = x_nchw.shape
    Chid = b1f.shape[-1] // W
    Cout = b2f.shape[-1] // W

    # NCHW -> row-flattened NHWC (N, H, W*Cin); layout plumbing fused by XLA.
    xf = jnp.transpose(x_nchw, (0, 2, 3, 1)).reshape(N, H, W * Cin)

    kernel = functools.partial(_fused_encoder_kernel, H, W, Cin, Chid, Cout)
    # NOTE: whole-image blocks are fine at these sizes (<1 MiB of VMEM). If
    # H/W grow, add an H-row grid axis (8-row blocks + 2-row halo) so the
    # footprint stays inside v7x's 64 MiB VMEM.
    of = pl.pallas_call(
        kernel,
        out_shape=jax.ShapeDtypeStruct((N, H, W * Cout), x_nchw.dtype),
        grid=(N,),
        in_specs=[
            pl.BlockSpec((1, H, W * Cin), lambda n: (n, 0, 0)),
            pl.BlockSpec((3, (W + 2) * Cin, W * Chid), lambda n: (0, 0, 0)),
            pl.BlockSpec((1, W * Chid), lambda n: (0, 0)),
            pl.BlockSpec((3, (W + 2) * Chid, W * Cout), lambda n: (0, 0, 0)),
            pl.BlockSpec((1, W * Cout), lambda n: (0, 0)),
        ],
        out_specs=pl.BlockSpec((1, H, W * Cout), lambda n: (n, 0, 0)),
        scratch_shapes=[
            pltpu.VMEM((H + 2, (W + 2) * Cin), jnp.float32),
            pltpu.VMEM((H + 2, (W + 2) * Chid), jnp.float32),
        ],
        compiler_params=pltpu.CompilerParams(
            dimension_semantics=("parallel",)),  # v7x: 2 TCs split the batch
    )(xf, m1, b1f, m2, b2f)

    # row-flattened NHWC -> NCHW to match the PyTorch module semantics.
    return jnp.transpose(of.reshape(N, H, W, Cout), (0, 3, 1, 2))


class ImageEncoderPallas:
    """Pallas port of Conv2d(Cin,8,3,p=1)->ReLU->Conv2d(8,Cout,3,p=1)->ReLU."""

    def __init__(self, in_channels=3, out_channels=16,
                 key=jax.random.PRNGKey(42)):
        k1, k2, k3, k4 = jax.random.split(key, 4)
        hidden = 8
        self.hidden = hidden
        self.out_channels = out_channels
        # Deterministic synthetic init, HWIO layout.
        self.w1 = 0.1 * jax.random.normal(k1, (3, 3, in_channels, hidden), jnp.float32)
        self.b1 = 0.1 * jax.random.normal(k2, (hidden,), jnp.float32)
        self.w2 = 0.1 * jax.random.normal(k3, (3, 3, hidden, out_channels), jnp.float32)
        self.b2 = 0.1 * jax.random.normal(k4, (out_channels,), jnp.float32)
        self._band_cache = {}

    def _packed_params(self, W):
        if W not in self._band_cache:
            m1 = _conv3x3_band_matrices(self.w1, W)
            m2 = _conv3x3_band_matrices(self.w2, W)
            b1f = jnp.tile(self.b1, W).reshape(1, W * self.hidden)
            b2f = jnp.tile(self.b2, W).reshape(1, W * self.out_channels)
            self._band_cache[W] = (m1, b1f, m2, b2f)
        return self._band_cache[W]

    def __call__(self, x_nchw):
        m1, b1f, m2, b2f = self._packed_params(x_nchw.shape[-1])
        return _encoder_forward(x_nchw, m1, b1f, m2, b2f)


def _reference_forward(x_nchw, enc):
    """Pure-JAX reference (lax conv), matching the PyTorch module semantics."""
    x = jnp.transpose(x_nchw, (0, 2, 3, 1))
    dn = ("NHWC", "HWIO", "NHWC")

    def conv(x, w, b):
        y = lax.conv_general_dilated(x, w, window_strides=(1, 1),
                                     padding="SAME", dimension_numbers=dn)
        return jnp.maximum(y + b[None, None, None, :], 0.0)

    y = conv(conv(x, enc.w1, enc.b1), enc.w2, enc.b2)
    return jnp.transpose(y, (0, 3, 1, 2))


if __name__ == "__main__":
    key = jax.random.PRNGKey(0)
    N, Cin, H, W = 2, 3, 16, 16
    x = jax.random.normal(key, (N, Cin, H, W), jnp.float32)

    enc = ImageEncoderPallas(in_channels=Cin, out_channels=16,
                             key=jax.random.PRNGKey(42))

    out = jax.block_until_ready(enc(x))
    assert out.shape == (N, 16, H, W), out.shape

    ref = jax.block_until_ready(_reference_forward(x, enc))
    assert jnp.allclose(out, ref, atol=1e-4, rtol=1e-4), "mismatch vs reference"

    print("KERNEL_OK")
</pallas_src>

<mosaic_0001>
module attributes {stable_mosaic.version = 11 : i64} {
  func.func @_fused_encoder_kernel(%arg0: i32, %arg1: memref<1x16x48xf32, #tpu.memory_space<vmem>>, %arg2: memref<3x54x128xf32, #tpu.memory_space<vmem>>, %arg3: memref<1x128xf32, #tpu.memory_space<vmem>>, %arg4: memref<3x144x256xf32, #tpu.memory_space<vmem>>, %arg5: memref<1x256xf32, #tpu.memory_space<vmem>>, %arg6: memref<1x16x256xf32, #tpu.memory_space<vmem>>, %arg7: memref<18x54xf32, #tpu.memory_space<vmem>>, %arg8: memref<18x144xf32, #tpu.memory_space<vmem>>) attributes {dimension_semantics = [#tpu.dimension_semantics<parallel>], iteration_bounds = array<i64: 2>, scalar_prefetch = 0 : i64, scratch_operands = 2 : i64, tpu.core_type = #tpu.core_type<tc>, window_params = [{transform_indices = @transform_0, window_bounds = array<i64: 1, 16, 48>}, {pipeline_mode = #tpu.pipeline_mode<synchronous>, transform_indices = @transform_1, window_bounds = array<i64: 3, 54, 128>}, {pipeline_mode = #tpu.pipeline_mode<synchronous>, transform_indices = @transform_2, window_bounds = array<i64: 1, 128>}, {pipeline_mode = #tpu.pipeline_mode<synchronous>, transform_indices = @transform_3, window_bounds = array<i64: 3, 144, 256>}, {pipeline_mode = #tpu.pipeline_mode<synchronous>, transform_indices = @transform_4, window_bounds = array<i64: 1, 256>}, {transform_indices = @transform_5, window_bounds = array<i64: 1, 16, 256>}]} {
    %cst = arith.constant 0.000000e+00 : f32
    %0 = vector.broadcast %cst : f32 to vector<18x54xf32>
    %c0 = arith.constant 0 : index
    %c0_0 = arith.constant 0 : index
    %1 = vector.load %arg7[%c0, %c0_0] : memref<18x54xf32, #tpu.memory_space<vmem>>, vector<18x54xf32>
    tpu.vector_store %arg7[%c0, %c0_0], %0 {strides = array<i32>} : memref<18x54xf32, #tpu.memory_space<vmem>>, vector<18x54xf32>,
    %c0_1 = arith.constant 0 : index
    %c0_2 = arith.constant 0 : index
    %c0_3 = arith.constant 0 : index
    %2 = vector.load %arg1[%c0_1, %c0_2, %c0_3] : memref<1x16x48xf32, #tpu.memory_space<vmem>>, vector<1x16x48xf32>
    %3 = vector.shape_cast %2 : vector<1x16x48xf32> to vector<16x48xf32>
    %c1 = arith.constant 1 : index
    %c3 = arith.constant 3 : index
    %4 = vector.load %arg7[%c1, %c3] : memref<18x54xf32, #tpu.memory_space<vmem>>, vector<16x48xf32>
    tpu.vector_store %arg7[%c1, %c3], %3 {strides = array<i32>} : memref<18x54xf32, #tpu.memory_space<vmem>>, vector<16x48xf32>,
    %cst_4 = arith.constant 0.000000e+00 : f32
    %5 = vector.broadcast %cst_4 : f32 to vector<16x128xf32>
    %c0_5 = arith.constant 0 : index
    %c0_6 = arith.constant 0 : index
    %6 = vector.load %arg7[%c0_5, %c0_6] : memref<18x54xf32, #tpu.memory_space<vmem>>, vector<16x54xf32>
    %c0_7 = arith.constant 0 : index
    %c0_8 = arith.constant 0 : index
    %c0_9 = arith.constant 0 : index
    %7 = vector.load %arg2[%c0_7, %c0_8, %c0_9] : memref<3x54x128xf32, #tpu.memory_space<vmem>>, vector<1x54x128xf32>
    %8 = vector.shape_cast %7 : vector<1x54x128xf32> to vector<54x128xf32>
    %cst_10 = arith.constant dense<0.000000e+00> : vector<16x128xf32>
    %9 = tpu.matmul %6, %8, %cst_10 {dimension_numbers = #tpu.dot_dimension_numbers<[1], [0], [0], [1], [0, 0, 1, 1], [], []>} : vector<16x54xf32>, vector<54x128xf32>, vector<16x128xf32> -> vector<16x128xf32>
    %10 = arith.addf %5, %9 : vector<16x128xf32>
    %c1_11 = arith.constant 1 : index
    %c0_12 = arith.constant 0 : index
    %11 = vector.load %arg7[%c1_11, %c0_12] : memref<18x54xf32, #tpu.memory_space<vmem>>, vector<16x54xf32>
    %c1_13 = arith.constant 1 : index
    %c0_14 = arith.constant 0 : index
    %c0_15 = arith.constant 0 : index
    %12 = vector.load %arg2[%c1_13, %c0_14, %c0_15] : memref<3x54x128xf32, #tpu.memory_space<vmem>>, vector<1x54x128xf32>
    %13 = vector.shape_cast %12 : vector<1x54x128xf32> to vector<54x128xf32>
    %cst_16 = arith.constant dense<0.000000e+00> : vector<16x128xf32>
    %14 = tpu.matmul %11, %13, %cst_16 {dimension_numbers = #tpu.dot_dimension_numbers<[1], [0], [0], [1], [0, 0, 1, 1], [], []>} : vector<16x54xf32>, vector<54x128xf32>, vector<16x128xf32> -> vector<16x128xf32>
    %15 = arith.addf %10, %14 : vector<16x128xf32>
    %c2 = arith.constant 2 : index
    %c0_17 = arith.constant 0 : index
    %16 = vector.load %arg7[%c2, %c0_17] : memref<18x54xf32, #tpu.memory_space<vmem>>, vector<16x54xf32>
    %c2_18 = arith.constant 2 : index
    %c0_19 = arith.constant 0 : index
    %c0_20 = arith.constant 0 : index
    %17 = vector.load %arg2[%c2_18, %c0_19, %c0_20] : memref<3x54x128xf32, #tpu.memory_space<vmem>>, vector<1x54x128xf32>
    %18 = vector.shape_cast %17 : vector<1x54x128xf32> to vector<54x128xf32>
    %cst_21 = arith.constant dense<0.000000e+00> : vector<16x128xf32>
    %19 = tpu.matmul %16, %18, %cst_21 {dimension_numbers = #tpu.dot_dimension_numbers<[1], [0], [0], [1], [0, 0, 1, 1], [], []>} : vector<16x54xf32>, vector<54x128xf32>, vector<16x128xf32> -> vector<16x128xf32>
    %20 = arith.addf %15, %19 : vector<16x128xf32>
    %c0_22 = arith.constant 0 : index
    %c0_23 = arith.constant 0 : index
    %21 = vector.load %arg3[%c0_22, %c0_23] : memref<1x128xf32, #tpu.memory_space<vmem>>, vector<1x128xf32>
    %22 = vector.broadcast %21 : vector<1x128xf32> to vector<16x128xf32>
    %23 = arith.addf %20, %22 : vector<16x128xf32>
    %cst_24 = arith.constant 0.000000e+00 : f32
    %24 = vector.broadcast %cst_24 : f32 to vector<16x128xf32>
    %25 = arith.maximumf %23, %24 : vector<16x128xf32>
    %cst_25 = arith.constant 0.000000e+00 : f32
    %26 = vector.broadcast %cst_25 : f32 to vector<18x144xf32>
    %c0_26 = arith.constant 0 : index
    %c0_27 = arith.constant 0 : index
    %27 = vector.load %arg8[%c0_26, %c0_27] : memref<18x144xf32, #tpu.memory_space<vmem>>, vector<18x144xf32>
    tpu.vector_store %arg8[%c0_26, %c0_27], %26 {strides = array<i32>} : memref<18x144xf32, #tpu.memory_space<vmem>>, vector<18x144xf32>,
    %c1_28 = arith.constant 1 : index
    %c8 = arith.constant 8 : index
    %28 = vector.load %arg8[%c1_28, %c8] : memref<18x144xf32, #tpu.memory_space<vmem>>, vector<16x128xf32>
    tpu.vector_store %arg8[%c1_28, %c8], %25 {strides = array<i32>} : memref<18x144xf32, #tpu.memory_space<vmem>>, vector<16x128xf32>,
    %cst_29 = arith.constant 0.000000e+00 : f32
    %29 = vector.broadcast %cst_29 : f32 to vector<16x256xf32>
    %c0_30 = arith.constant 0 : index
    %c0_31 = arith.constant 0 : index
    %30 = vector.load %arg8[%c0_30, %c0_31] : memref<18x144xf32, #tpu.memory_space<vmem>>, vector<16x144xf32>
    %c0_32 = arith.constant 0 : index
    %c0_33 = arith.constant 0 : index
    %c0_34 = arith.constant 0 : index
    %31 = vector.load %arg4[%c0_32, %c0_33, %c0_34] : memref<3x144x256xf32, #tpu.memory_space<vmem>>, vector<1x144x256xf32>
    %32 = vector.shape_cast %31 : vector<1x144x256xf32> to vector<144x256xf32>
    %cst_35 = arith.constant dense<0.000000e+00> : vector<16x256xf32>
    %33 = tpu.matmul %30, %32, %cst_35 {dimension_numbers = #tpu.dot_dimension_numbers<[1], [0], [0], [1], [0, 0, 1, 1], [], []>} : vector<16x144xf32>, vector<144x256xf32>, vector<16x256xf32> -> vector<16x256xf32>
    %34 = arith.addf %29, %33 : vector<16x256xf32>
    %c1_36 = arith.constant 1 : index
    %c0_37 = arith.constant 0 : index
    %35 = vector.load %arg8[%c1_36, %c0_37] : memref<18x144xf32, #tpu.memory_space<vmem>>, vector<16x144xf32>
    %c1_38 = arith.constant 1 : index
    %c0_39 = arith.constant 0 : index
    %c0_40 = arith.constant 0 : index
    %36 = vector.load %arg4[%c1_38, %c0_39, %c0_40] : memref<3x144x256xf32, #tpu.memory_space<vmem>>, vector<1x144x256xf32>
    %37 = vector.shape_cast %36 : vector<1x144x256xf32> to vector<144x256xf32>
    %cst_41 = arith.constant dense<0.000000e+00> : vector<16x256xf32>
    %38 = tpu.matmul %35, %37, %cst_41 {dimension_numbers = #tpu.dot_dimension_numbers<[1], [0], [0], [1], [0, 0, 1, 1], [], []>} : vector<16x144xf32>, vector<144x256xf32>, vector<16x256xf32> -> vector<16x256xf32>
    %39 = arith.addf %34, %38 : vector<16x256xf32>
    %c2_42 = arith.constant 2 : index
    %c0_43 = arith.constant 0 : index
    %40 = vector.load %arg8[%c2_42, %c0_43] : memref<18x144xf32, #tpu.memory_space<vmem>>, vector<16x144xf32>
    %c2_44 = arith.constant 2 : index
    %c0_45 = arith.constant 0 : index
    %c0_46 = arith.constant 0 : index
    %41 = vector.load %arg4[%c2_44, %c0_45, %c0_46] : memref<3x144x256xf32, #tpu.memory_space<vmem>>, vector<1x144x256xf32>
    %42 = vector.shape_cast %41 : vector<1x144x256xf32> to vector<144x256xf32>
    %cst_47 = arith.constant dense<0.000000e+00> : vector<16x256xf32>
    %43 = tpu.matmul %40, %42, %cst_47 {dimension_numbers = #tpu.dot_dimension_numbers<[1], [0], [0], [1], [0, 0, 1, 1], [], []>} : vector<16x144xf32>, vector<144x256xf32>, vector<16x256xf32> -> vector<16x256xf32>
    %44 = arith.addf %39, %43 : vector<16x256xf32>
    %c0_48 = arith.constant 0 : index
    %c0_49 = arith.constant 0 : index
    %45 = vector.load %arg5[%c0_48, %c0_49] : memref<1x256xf32, #tpu.memory_space<vmem>>, vector<1x256xf32>
    %46 = vector.broadcast %45 : vector<1x256xf32> to vector<16x256xf32>
    %47 = arith.addf %44, %46 : vector<16x256xf32>
    %cst_50 = arith.constant 0.000000e+00 : f32
    %48 = vector.broadcast %cst_50 : f32 to vector<16x256xf32>
    %49 = arith.maximumf %47, %48 : vector<16x256xf32>
    %c0_51 = arith.constant 0 : index
    %c0_52 = arith.constant 0 : index
    %c0_53 = arith.constant 0 : index
    %50 = vector.load %arg6[%c0_51, %c0_52, %c0_53] : memref<1x16x256xf32, #tpu.memory_space<vmem>>, vector<1x16x256xf32>
    %51 = vector.shape_cast %50 : vector<1x16x256xf32> to vector<16x256xf32>
    %52 = vector.shape_cast %49 : vector<16x256xf32> to vector<1x16x256xf32>
    tpu.vector_store %arg6[%c0_51, %c0_52, %c0_53], %52 {strides = array<i32>} : memref<1x16x256xf32, #tpu.memory_space<vmem>>, vector<1x16x256xf32>,
    return
  }
  func.func @transform_0(%arg0: i32) -> (i32, i32, i32) {
    %c0_i32 = arith.constant 0 : i32
    %c0_i32_0 = arith.constant 0 : i32
    %c0_i32_1 = arith.constant 0 : i32
    return %arg0, %c0_i32, %c0_i32_0 : i32, i32, i32
  }
  func.func @transform_1(%arg0: i32) -> (i32, i32, i32) {
    %c0_i32 = arith.constant 0 : i32
    %c0_i32_0 = arith.constant 0 : i32
    %c0_i32_1 = arith.constant 0 : i32
    %c0_i32_2 = arith.constant 0 : i32
    return %c0_i32, %c0_i32_0, %c0_i32_1 : i32, i32, i32
  }
  func.func @transform_2(%arg0: i32) -> (i32, i32) {
    %c0_i32 = arith.constant 0 : i32
    %c0_i32_0 = arith.constant 0 : i32
    %c0_i32_1 = arith.constant 0 : i32
    return %c0_i32, %c0_i32_0 : i32, i32
  }
  func.func @transform_3(%arg0: i32) -> (i32, i32, i32) {
    %c0_i32 = arith.constant 0 : i32
    %c0_i32_0 = arith.constant 0 : i32
    %c0_i32_1 = arith.constant 0 : i32
    %c0_i32_2 = arith.constant 0 : i32
    return %c0_i32, %c0_i32_0, %c0_i32_1 : i32, i32, i32
  }
  func.func @transform_4(%arg0: i32) -> (i32, i32) {
    %c0_i32 = arith.constant 0 : i32
    %c0_i32_0 = arith.constant 0 : i32
    %c0_i32_1 = arith.constant 0 : i32
    return %c0_i32, %c0_i32_0 : i32, i32
  }
  func.func @transform_5(%arg0: i32) -> (i32, i32, i32) {
    %c0_i32 = arith.constant 0 : i32
    %c0_i32_0 = arith.constant 0 : i32
    %c0_i32_1 = arith.constant 0 : i32
    return %arg0, %c0_i32, %c0_i32_0 : i32, i32, i32
  }
}

</mosaic_0001>

<llo_original>
// kernel: _encoder_forward.1
$region0: #{_encoder_forward.1}
  #allocation0 [shape = 'u32[]', space=smem, size = 0x4, offset = 0x4, fixed_abs, tag = 'smem constant byte address 0x4 - core index']
  #allocation1 [shape = 'u32[72,128]{1,0:T(1,128)}', space=vmem, size = 0x9000, scoped, tag = 'internal scratch']
  #allocation2 [shape = 'f32[18,54]{1,0:T(8,128)}', space=vmem, size = 0x3000, scoped, tag = 'scratch operand']
  #allocation3 [shape = 'f32[18,144]{1,0:T(8,128)}', space=vmem, size = 0x6000, scoped, tag = 'scratch operand']
  %s0 = inlined_call_operand.vmem [shape: f32[2,16,48], index: 0, kind: input, shape index: {}]
  %s1 = inlined_call_operand.vmem [shape: f32[3,54,128], index: 1, kind: input, shape index: {}]
  %s2 = inlined_call_operand.vmem [shape: f32[1,128], index: 2, kind: input, shape index: {}]
  %s3 = inlined_call_operand.hbm [shape: f32[3,144,256], index: 3, kind: input, shape index: {}]
  %s4 = inlined_call_operand.vmem [shape: f32[1,256], index: 4, kind: input, shape index: {}]
  %s5 = inlined_call_operand.vmem [shape: f32[2,16,256], index: 5, kind: output, shape index: {}]
  %s6 = sld [smem:[#allocation0]]
  $region57: #{_encoder_forward.1} parent=0
    _
  %s8 = ssub.s32 1, %s6
  %s9 = scalar_select 0, %s8, %s6
  $region1: #{_encoder_forward.1} parent=0
    #allocation4 [shape = 'u8[442368]{0}', space=vmem, size = 0x6c000, scoped, tag = 'input window, operand 3, single buffered']
    #allocation5 [shape = 's32[2]{0}', space=sflag, size = 0x8, scoped, tag = 'scoped memory for _encoder_forward.1']
    %10 = vsyncpa [#allocation5], 0
    loop: start=0, step=1, limit=4
    $region2: #{_encoder_forward.1} parent=1 // loop_pre_header
      _
    $region3: #{_encoder_forward.1} parent=1 // loop_header
      %s12 = sphi 0, %s16
      %p13 = scmp.ge.s32.totalorder %s12, 4
      %s22 = sphi 0, %s24
      %s25 = sphi 0, %s22
      %s26 = sphi 0, %s25
      %s42 = sphi 0, %s26
      %s46 = sphi 0, %s46
      %s48 = sphi 0, %s46
      %s49 = sphi 0, %s48
      %s63 = sphi 0, %s49
      %s67 = sphi 0, %s67
      %s69 = sphi 0, %s67
      %s70 = sphi 0, %s69
      %s84 = sphi 0, %s70
      %s88 = sphi 0, %s88
      %s90 = sphi 0, %s88
      %s91 = sphi 0, %s90
      %s105 = sphi 0, %s91
      %s109 = sphi 0, %s109
      %s111 = sphi 0, %s109
      %s112 = sphi 0, %s111
      %s126 = sphi 0, %s112
      %s132 = sphi 0, %s134
      %s135 = sphi 0, %s132
      %s136 = sphi 0, %s135
      %s152 = sphi 0, %s136
    $region4: #{_encoder_forward.1} parent=1 // loop_header_branch
      %15 = sbr.rel (%p13) target = $region8
    $region5: #{_encoder_forward.1} parent=1 // loop_body
      %s17 = ssub.s32 %s12, 1
      %s18 = ssub.s32 %s12, 2
      %s19 = sadd.s32 %s12, 1
      %s20 = ssub.s32 %s12, %s19
      %p21 = scmp.eq.s32.totalorder %s20, 0
      %s23 = sadd.s32 %s22, 1
      %s24 = scalar_select %p21, %s22, %s23
      %p27 = pneg %p21
      %p28 = scmp.eq.s32.totalorder %s12, 1
      %p29 = por %p27, %p28
      %p30 = scmp.ne.s32.totalorder %s22, %s25
      %p31 = scmp.eq.s32.totalorder %s12, 0
      %p32 = por %p30, %p31
      %p33 = scmp.ne.s32.totalorder %s22, %s25
      %p34 = scmp.eq.s32.totalorder %s17, 1
      %p35 = por %p33, %p34
      %p36 = scmp.ne.s32.totalorder %s25, %s26
      %p37 = scmp.eq.s32.totalorder %s17, 0
      %p38 = por %p36, %p37
      %p39 = scmp.ne.s32.totalorder %s25, %s26
      %p40 = scmp.eq.s32.totalorder %s18, 1
      %p41 = por %p39, %p40
      %p43 = scmp.ne.s32.totalorder %s26, %s42
      %p44 = scmp.eq.s32.totalorder %s18, 0
      %p45 = por %p43, %p44
      %s47 = sadd.s32 %s46, 1
      %p50 = scmp.eq.s32.totalorder %s12, 1
      %p51 = scmp.ne.s32.totalorder %s46, %s48
      %p52 = scmp.eq.s32.totalorder %s12, 0
      %p53 = por %p51, %p52
      %p54 = scmp.ne.s32.totalorder %s46, %s48
      %p55 = scmp.eq.s32.totalorder %s17, 1
      %p56 = por %p54, %p55
      %p57 = scmp.ne.s32.totalorder %s48, %s49
      %p58 = scmp.eq.s32.totalorder %s17, 0
      %p59 = por %p57, %p58
      %p60 = scmp.ne.s32.totalorder %s48, %s49
      %p61 = scmp.eq.s32.totalorder %s18, 1
      %p62 = por %p60, %p61
      %p64 = scmp.ne.s32.totalorder %s49, %s63
      %p65 = scmp.eq.s32.totalorder %s18, 0
      %p66 = por %p64, %p65
      %s68 = sadd.s32 %s67, 1
      %p71 = scmp.eq.s32.totalorder %s12, 1
      %p72 = scmp.ne.s32.totalorder %s67, %s69
      %p73 = scmp.eq.s32.totalorder %s12, 0
      %p74 = por %p72, %p73
      %p75 = scmp.ne.s32.totalorder %s67, %s69
      %p76 = scmp.eq.s32.totalorder %s17, 1
      %p77 = por %p75, %p76
      %p78 = scmp.ne.s32.totalorder %s69, %s70
      %p79 = scmp.eq.s32.totalorder %s17, 0
      %p80 = por %p78, %p79
      %p81 = scmp.ne.s32.totalorder %s69, %s70
      %p82 = scmp.eq.s32.totalorder %s18, 1
      %p83 = por %p81, %p82
      %p85 = scmp.ne.s32.totalorder %s70, %s84
      %p86 = scmp.eq.s32.totalorder %s18, 0
      %p87 = por %p85, %p86
      %s89 = sadd.s32 %s88, 1
      %p92 = scmp.eq.s32.totalorder %s12, 1
      %p93 = scmp.ne.s32.totalorder %s88, %s90
      %p94 = scmp.eq.s32.totalorder %s12, 0
      %p95 = por %p93, %p94
      %p96 = scmp.ne.s32.totalorder %s88, %s90
      %p97 = scmp.eq.s32.totalorder %s17, 1
      %p98 = por %p96, %p97
      %p99 = scmp.ne.s32.totalorder %s90, %s91
      %p100 = scmp.eq.s32.totalorder %s17, 0
      %p101 = por %p99, %p100
      %p102 = scmp.ne.s32.totalorder %s90, %s91
      %p103 = scmp.eq.s32.totalorder %s18, 1
      %p104 = por %p102, %p103
      %p106 = scmp.ne.s32.totalorder %s91, %s105
      %p107 = scmp.eq.s32.totalorder %s18, 0
      %p108 = por %p106, %p107
      %s110 = sadd.s32 %s109, 1
      %p113 = scmp.eq.s32.totalorder %s12, 1
      %p114 = scmp.ne.s32.totalorder %s109, %s111
      %p115 = scmp.eq.s32.totalorder %s12, 0
      %p116 = por %p114, %p115
      %p117 = scmp.ne.s32.totalorder %s109, %s111
      %p118 = scmp.eq.s32.totalorder %s17, 1
      %p119 = por %p117, %p118
      %p120 = scmp.ne.s32.totalorder %s111, %s112
      %p121 = scmp.eq.s32.totalorder %s17, 0
      %p122 = por %p120, %p121
      %p123 = scmp.ne.s32.totalorder %s111, %s112
      %p124 = scmp.eq.s32.totalorder %s18, 1
      %p125 = por %p123, %p124
      %p127 = scmp.ne.s32.totalorder %s112, %s126
      %p128 = scmp.eq.s32.totalorder %s18, 0
      %p129 = por %p127, %p128
      %s130 = ssub.s32 %s12, %s19
      %p131 = scmp.eq.s32.totalorder %s130, 0
      %s133 = sadd.s32 %s132, 1
      %s134 = scalar_select %p131, %s132, %s133
      %p137 = pneg %p131
      %p138 = scmp.eq.s32.totalorder %s12, 1
      %p139 = por %p137, %p138
      %p140 = scmp.ne.s32.totalorder %s132, %s135
      %p141 = scmp.eq.s32.totalorder %s12, 0
      %p142 = por %p140, %p141
      %p143 = scmp.ne.s32.totalorder %s132, %s135
      %p144 = scmp.eq.s32.totalorder %s17, 1
      %p145 = por %p143, %p144
      %p146 = scmp.ne.s32.totalorder %s135, %s136
      %p147 = scmp.eq.s32.totalorder %s17, 0
      %p148 = por %p146, %p147
      %p149 = scmp.ne.s32.totalorder %s135, %s136
      %p150 = scmp.eq.s32.totalorder %s18, 1
      %p151 = por %p149, %p150
      %p153 = scmp.ne.s32.totalorder %s136, %s152
      %p154 = scmp.eq.s32.totalorder %s18, 0
      %p155 = por %p153, %p154
      %p156 = scmp.le.s32.totalorder 1, %s12
      %p157 = scmp.lt.s32.totalorder %s12, 3
      %p158 = pnand %p156, %p157
      %p159 = pneg %p158
      // Predicated region
      $region9: #{_encoder_forward.1} parent=5 // pred_check
        _
      $region10: #{_encoder_forward.1} parent=5 // pred_check_branch
        %161 = sbr.rel (%p158) target = $region12
      $region11: #{_encoder_forward.1} parent=5 // pred_region
        %s162 = ssub.s32 %s12, 1
        // Predicated region
        $region13: #{_encoder_forward.1} parent=11 // pred_check
          %p163 = pneg %p59
        $region14: #{_encoder_forward.1} parent=11 // pred_check_branch
          %165 = sbr.rel (%p163) target = $region16
        $region15: #{_encoder_forward.1} parent=11 // pred_region
          _
        $region16: #{_encoder_forward.1} parent=11 // pred_fallthru
          _
        // Predicated region
        $region17: #{_encoder_forward.1} parent=11 // pred_check
          %p166 = pneg %p80
        $region18: #{_encoder_forward.1} parent=11 // pred_check_branch
          %168 = sbr.rel (%p166) target = $region20
        $region19: #{_encoder_forward.1} parent=11 // pred_region
          _
        $region20: #{_encoder_forward.1} parent=11 // pred_fallthru
          _
        // Predicated region
        $region21: #{_encoder_forward.1} parent=11 // pred_check
          %p169 = pneg %p101
        $region22: #{_encoder_forward.1} parent=11 // pred_check_branch
          %171 = sbr.rel (%p169) target = $region24
        $region23: #{_encoder_forward.1} parent=11 // pred_region
          %173 = vsyncadd [#allocation5], 0
          %s174 = sshll.u32 %s3, 4
          %s175 = int_to_ptr.hbm [resolvable:$true] %s174
          %s176 = sshll.u32 [#allocation4], 4
          %s177 = int_to_ptr.vmem [resolvable:$true] %s176
          %182 = dma.hbm_to_vmem [thread:$0]  %s175, 13824, %s177, [#allocation5], 256, 256, 16
        $region24: #{_encoder_forward.1} parent=11 // pred_fallthru
          _
        // Predicated region
        $region25: #{_encoder_forward.1} parent=11 // pred_check
          %p183 = pneg %p122
        $region26: #{_encoder_forward.1} parent=11 // pred_check_branch
          %185 = sbr.rel (%p183) target = $region28
        $region27: #{_encoder_forward.1} parent=11 // pred_region
          _
        $region28: #{_encoder_forward.1} parent=11 // pred_fallthru
          _
      $region12: #{_encoder_forward.1} parent=5 // pred_fallthru
        _
      %p186 = scmp.lt.s32.totalorder %s12, 2
      // Predicated region
      $region29: #{_encoder_forward.1} parent=5 // pred_check
        %p187 = pneg %p186
      $region30: #{_encoder_forward.1} parent=5 // pred_check_branch
        %189 = sbr.rel (%p187) target = $region32
      $region31: #{_encoder_forward.1} parent=5 // pred_region
        // Predicated region
        $region33: #{_encoder_forward.1} parent=31 // pred_check
          %p190 = pneg %p32
        $region34: #{_encoder_forward.1} parent=31 // pred_check_branch
          %192 = sbr.rel (%p190) target = $region36
        $region35: #{_encoder_forward.1} parent=31 // pred_region
          %p193 = scmp.lt.s32.totalorder %s12, 1
          %s194 = scalar_select %p193, %s12, 1
          %s195 = smul.addr %s194, 2
          %s196 = smul.addr %s195, 8
          %s197 = scalar_lea.vmem %s0, %s196
        $region36: #{_encoder_forward.1} parent=31 // pred_fallthru
          _
      $region32: #{_encoder_forward.1} parent=5 // pred_fallthru
        _
      %p198 = scmp.le.s32.totalorder 1, %s12
      %p199 = scmp.lt.s32.totalorder %s12, 3
      %p200 = pnand %p198, %p199
      %p201 = pneg %p200
      // Predicated region
      $region37: #{_encoder_forward.1} parent=5 // pred_check
        _
      $region38: #{_encoder_forward.1} parent=5 // pred_check_branch
        %203 = sbr.rel (%p200) target = $region40
      $region39: #{_encoder_forward.1} parent=5 // pred_region
        %s204 = ssub.s32 %s12, 1
        // Predicated region
        $region41: #{_encoder_forward.1} parent=39 // pred_check
          %p205 = pneg %p101
        $region42: #{_encoder_forward.1} parent=39 // pred_check_branch
          %207 = sbr.rel (%p205) target = $region44
        $region43: #{_encoder_forward.1} parent=39 // pred_region
          %209 = dma.done [#allocation5], 13824
        $region44: #{_encoder_forward.1} parent=39 // pred_fallthru
          _
        %p210 = scmp.lt.s32.totalorder %s17, 1
        %s211 = scalar_select %p210, %s17, 1
        %s212 = smul.addr %s211, 2
        %s213 = smul.addr %s212, 8
        %s214 = scalar_lea.vmem %s0, %s213
        %p215 = pneg %p38
        %p216 = pneg %p35
        %p217 = pneg %p59
        %p218 = pneg %p56
        %p219 = pneg %p80
        %p220 = pneg %p77
        %p221 = pneg %p101
        %p222 = pneg %p98
        %p223 = pneg %p122
        %p224 = pneg %p119
        %p225 = pneg %p148
        %p226 = pneg %p145
        %p227 = scmp.lt.s32.totalorder %s17, 1
        %s228 = scalar_select %p227, %s17, 1
        %s229 = smul.addr %s228, 4
        %s230 = smul.addr %s229, 8
        %s231 = scalar_lea.vmem %s5, %s230
        %p232 = scmp.lt.s32.totalorder %s17, 1
        %s233 = scalar_select %p232, %s17, 1
        %s234 = smul.addr %s233, 2
        %s235 = smul.addr %s234, 8
        %s236 = scalar_lea.vmem %s0, %s235
        %p237 = scmp.lt.s32.totalorder %s17, 1
        %s238 = scalar_select %p237, %s17, 1
        %s239 = smul.addr %s238, 4
        %s240 = smul.addr %s239, 8
        %s241 = scalar_lea.vmem %s5, %s240
        %vm242 = vcmask 441344
        %243 = vst.msk [vmem:[#allocation2] sm:$0xff] %vm242, 0.0
        %244 = vst.msk [vmem:[#allocation2 + $0x8] sm:$0xff] %vm242, 0.0
        %vm245 = vcmask 435200
        %246 = vst.msk [vmem:[#allocation2 + $0x10] sm:$0x3] %vm245, 0.0
        %v247 = vld [vmem:[%s236] sm:$0xff]
        %v248 = vld [vmem:[%s236 + $0x8] sm:$0xff]
        %251 = vrot.lane.b32.xlu0 %v247, 3
        %v252 = vpop.permute.xlu0 %251
        %253 = vrot.lane.b32.xlu0 %v248, 3
        %v254 = vpop.permute.xlu0 %253
        %vm257 = vcmask 416792
        %258 = vst.msk [vmem:[#allocation2 + $0x1] sm:$0xff] %vm257, %v252
        %259 = vst.msk [vmem:[#allocation2 + $0x9] sm:$0xff] %vm257, %v254
        %v260 = vld [vmem:[#allocation2] sm:$0xff]
        %v261 = vld [vmem:[#allocation2 + $0x8] sm:$0xff]
        %v262 = vld [vmem:[%s1] sm:$0xff]
        %v263 = vld [vmem:[%s1 + $0x8] sm:$0xff]
        %v264 = vld [vmem:[%s1 + $0x10] sm:$0xff]
        %v265 = vld [vmem:[%s1 + $0x18] sm:$0xff]
        %v266 = vld [vmem:[%s1 + $0x20] sm:$0xff]
        %v267 = vld [vmem:[%s1 + $0x28] sm:$0xff]
        %v268 = vld [vmem:[%s1 + $0x30] sm:$0x3f]
        %v269 = vld [vmem:[#allocation2 + $0x1] sm:$0xff]
        %v270 = vld [vmem:[#allocation2 + $0x9] sm:$0xff]
        %s271 = scalar_lea.vmem %s1, 56
        %v272 = vld [vmem:[%s271] sm:$0xff]
        %v273 = vld [vmem:[%s271 + $0x8] sm:$0xff]
        %v274 = vld [vmem:[%s271 + $0x10] sm:$0xff]
        %v275 = vld [vmem:[%s271 + $0x18] sm:$0xff]
        %v276 = vld [vmem:[%s271 + $0x20] sm:$0xff]
        %v277 = vld [vmem:[%s271 + $0x28] sm:$0xff]
        %v278 = vld [vmem:[%s271 + $0x30] sm:$0x3f]
        %v280 = vsel %vm242, %v269, 0
        %v283 = vsel %vm242, %v270, 0
        %vm285 = vcmask 1045504
        %v287 = vsel %vm285, %v278, 0
        %289 = vmatpush.msra.mxu0 0.0
        %290 = vmatpush.msra.mxu0 0.0
        %291 = vmatpush.msra.mxu0 0.0
        %292 = vmatpush.msra.mxu0 0.0
        %293 = vmatpush.msra.mxu0 0.0
        %294 = vmatpush.msra.mxu0 0.0
        %295 = vmatpush.msra.mxu0 0.0
        %296 = vmatpush.msra.mxu0 0.0
        %297 = vmatpush.msra.mxu0 0.0
        %298 = vmatpush.msra.mxu0 %v287
        %299 = vmatpush.msra.mxu0 %v277
        %300 = vmatpush.msra.mxu0 %v276
        %301 = vmatpush.msra.mxu0 %v275
        %302 = vmatpush.msra.mxu0 %v274
        %303 = vmatpush.msra.mxu0 %v273
        %304 = vmatpush.msra.mxu0 %v272
        %305 = vmatmul.f32.gmra.mxu0 %v280
        %v306 = vpop.f32.mrf.mxu0
        %v307 = vadd.f32 0.0, %v306
        %308 = vmatmul.f32.gmra.mxu0 %v283
        %v309 = vpop.f32.mrf.mxu0
        %v310 = vadd.f32 0.0, %v309
        %311 = vdwg.mxu0
        %v313 = vsel %vm242, %v260, 0
        %v316 = vsel %vm242, %v261, 0
        %v319 = vsel %vm285, %v268, 0
        %321 = vmatpush.msra.mxu0 0.0
        %322 = vmatpush.msra.mxu0 0.0
        %323 = vmatpush.msra.mxu0 0.0
        %324 = vmatpush.msra.mxu0 0.0
        %325 = vmatpush.msra.mxu0 0.0
        %326 = vmatpush.msra.mxu0 0.0
        %327 = vmatpush.msra.mxu0 0.0
        %328 = vmatpush.msra.mxu0 0.0
        %329 = vmatpush.msra.mxu0 0.0
        %330 = vmatpush.msra.mxu0 %v319
        %331 = vmatpush.msra.mxu0 %v267
        %332 = vmatpush.msra.mxu0 %v266
        %333 = vmatpush.msra.mxu0 %v265
        %334 = vmatpush.msra.mxu0 %v264
        %335 = vmatpush.msra.mxu0 %v263
        %336 = vmatpush.msra.mxu0 %v262
        %337 = vmatmul.f32.gmra.mxu0 %v313
        %v338 = vpop.f32.mrf.mxu0
        %v339 = vadd.f32 %v307, %v338
        %340 = vmatmul.f32.gmra.mxu0 %v316
        %v341 = vpop.f32.mrf.mxu0
        %v342 = vadd.f32 %v310, %v341
        %343 = vdwg.mxu0
        %v344 = vld [vmem:[#allocation2 + $0x2] sm:$0xff]
        %v345 = vld [vmem:[#allocation2 + $0xa] sm:$0xff]
        %s346 = scalar_lea.vmem %s1, 112
        %v347 = vld [vmem:[%s346] sm:$0xff]
        %v348 = vld [vmem:[%s346 + $0x8] sm:$0xff]
        %v349 = vld [vmem:[%s346 + $0x10] sm:$0xff]
        %v350 = vld [vmem:[%s346 + $0x18] sm:$0xff]
        %v351 = vld [vmem:[%s346 + $0x20] sm:$0xff]
        %v352 = vld [vmem:[%s346 + $0x28] sm:$0xff]
        %v353 = vld [vmem:[%s346 + $0x30] sm:$0x3f]
        %v355 = vsel %vm242, %v344, 0
        %v358 = vsel %vm242, %v345, 0
        %v361 = vsel %vm285, %v353, 0
        %363 = vmatpush.msra.mxu0 0.0
        %364 = vmatpush.msra.mxu0 0.0
        %365 = vmatpush.msra.mxu0 0.0
        %366 = vmatpush.msra.mxu0 0.0
        %367 = vmatpush.msra.mxu0 0.0
        %368 = vmatpush.msra.mxu0 0.0
        %369 = vmatpush.msra.mxu0 0.0
        %370 = vmatpush.msra.mxu0 0.0
        %371 = vmatpush.msra.mxu0 0.0
        %372 = vmatpush.msra.mxu0 %v361
        %373 = vmatpush.msra.mxu0 %v352
        %374 = vmatpush.msra.mxu0 %v351
        %375 = vmatpush.msra.mxu0 %v350
        %376 = vmatpush.msra.mxu0 %v349
        %377 = vmatpush.msra.mxu0 %v348
        %378 = vmatpush.msra.mxu0 %v347
        %379 = vmatmul.f32.gmra.mxu0 %v355
        %v380 = vpop.f32.mrf.mxu0
        %v381 = vadd.f32 0.0, %v380
        %382 = vmatmul.f32.gmra.mxu0 %v358
        %v383 = vpop.f32.mrf.mxu0
        %v384 = vadd.f32 0.0, %v383
        %385 = vdwg.mxu0
        %v386 = vadd.f32 %v339, %v381
        %v387 = vadd.f32 %v342, %v384
        %v388 = vld [vmem:[%s2] sm:$0x1]
        %v390 = vperm.slane %v388, 0
        %v392 = vadd.f32 %v386, %v390
        %v393 = vadd.f32 %v387, %v390
        %v394 = vmax.f32 %v392, 0.0
        %v395 = vmax.f32 %v393, 0.0
        %396 = vst [vmem:[#allocation3] sm:$0xff] 0.0
        %vm397 = vcmask 130048
        %398 = vst.msk [vmem:[#allocation3 + $0x8] sm:$0xff] %vm397, 0.0
        %399 = vst [vmem:[#allocation3 + $0x10] sm:$0xff] 0.0
        %400 = vst.msk [vmem:[#allocation3 + $0x18] sm:$0xff] %vm397, 0.0
        %401 = vst [vmem:[#allocation3 + $0x20] sm:$0x3] 0.0
        %vm402 = vcmask 123904
        %403 = vst.msk [vmem:[#allocation3 + $0x28] sm:$0x3] %vm402, 0.0
        %vm406 = vcmask 1040384
        %v407 = vrot.slane %v394, 7
        %v408 = vrot.slane %v395, 7
        %v409 = vsel %vm406, %v407, %v408
        %410 = vrot.lane.b32.xlu0 %v407, 8
        %v411 = vpop.permute.xlu0 %410
        %412 = vrot.lane.b32.xlu0 %v409, 8
        %v413 = vpop.permute.xlu0 %412
        %414 = vrot.lane.b32.xlu0 %v408, 8
        %v415 = vpop.permute.xlu0 %414
        %vm419 = vcmask 1047617
        %420 = vst.msk [vmem:[#allocation3] sm:$0xfe] %vm419, %v411
        %vm421 = vcmask 64513
        %422 = vst.msk [vmem:[#allocation3 + $0x8] sm:$0xfe] %vm421, %v411
        %vm423 = vcmask 1047616
        %424 = vst.msk [vmem:[#allocation3 + $0x10] sm:$0xff] %vm423, %v413
        %vm425 = vcmask 64512
        %426 = vst.msk [vmem:[#allocation3 + $0x18] sm:$0xff] %vm425, %v413
        %vm427 = vcmask 1040448
        %428 = vst.msk [vmem:[#allocation3 + $0x20] sm:$0x1] %vm427, %v415
        %vm429 = vcmask 57344
        %430 = vst.msk [vmem:[#allocation3 + $0x28] sm:$0x1] %vm429, %v415
        %v431 = vld [vmem:[#allocation3] sm:$0xff]
        %v432 = vld [vmem:[#allocation3 + $0x8] sm:$0xff]
        %v433 = vld [vmem:[#allocation3 + $0x10] sm:$0xff]
        %v434 = vld [vmem:[#allocation3 + $0x18] sm:$0xff]
        %v435 = vld [vmem:[#allocation4] sm:$0xff]
        %v436 = vld [vmem:[#allocation4 + $0x8] sm:$0xff]
        %v437 = vld [vmem:[#allocation4 + $0x10] sm:$0xff]
        %v438 = vld [vmem:[#allocation4 + $0x18] sm:$0xff]
        %v439 = vld [vmem:[#allocation4 + $0x20] sm:$0xff]
        %v440 = vld [vmem:[#allocation4 + $0x28] sm:$0xff]
        %v441 = vld [vmem:[#allocation4 + $0x30] sm:$0xff]
        %v442 = vld [vmem:[#allocation4 + $0x38] sm:$0xff]
        %v443 = vld [vmem:[#allocation4 + $0x40] sm:$0xff]
        %v444 = vld [vmem:[#allocation4 + $0x48] sm:$0xff]
        %v445 = vld [vmem:[#allocation4 + $0x50] sm:$0xff]
        %v446 = vld [vmem:[#allocation4 + $0x58] sm:$0xff]
        %v447 = vld [vmem:[#allocation4 + $0x60] sm:$0xff]
        %v448 = vld [vmem:[#allocation4 + $0x68] sm:$0xff]
        %v449 = vld [vmem:[#allocation4 + $0x70] sm:$0xff]
        %v450 = vld [vmem:[#allocation4 + $0x78] sm:$0xff]
        %v451 = vld [vmem:[#allocation4 + $0x80] sm:$0xff]
        %v452 = vld [vmem:[#allocation4 + $0x88] sm:$0xff]
        %v453 = vld [vmem:[#allocation4 + $0x90] sm:$0xff]
        %v454 = vld [vmem:[#allocation4 + $0x98] sm:$0xff]
        %v455 = vld [vmem:[#allocation4 + $0xa0] sm:$0xff]
        %v456 = vld [vmem:[#allocation4 + $0xa8] sm:$0xff]
        %v457 = vld [vmem:[#allocation4 + $0xb0] sm:$0xff]
        %v458 = vld [vmem:[#allocation4 + $0xb8] sm:$0xff]
        %v459 = vld [vmem:[#allocation4 + $0xc0] sm:$0xff]
        %v460 = vld [vmem:[#allocation4 + $0xc8] sm:$0xff]
        %v461 = vld [vmem:[#allocation4 + $0xd0] sm:$0xff]
        %v462 = vld [vmem:[#allocation4 + $0xd8] sm:$0xff]
        %v463 = vld [vmem:[#allocation4 + $0xe0] sm:$0xff]
        %v464 = vld [vmem:[#allocation4 + $0xe8] sm:$0xff]
        %v465 = vld [vmem:[#allocation4 + $0xf0] sm:$0xff]
        %v466 = vld [vmem:[#allocation4 + $0xf8] sm:$0xff]
        %v467 = vld [vmem:[#allocation4 + $0x100] sm:$0xff]
        %v468 = vld [vmem:[#allocation4 + $0x108] sm:$0xff]
        %v469 = vld [vmem:[#allocation4 + $0x110] sm:$0xff]
        %v470 = vld [vmem:[#allocation4 + $0x118] sm:$0xff]
        %v471 = vld [vmem:[#allocation3] sm:$0xfe]
        %v472 = vld [vmem:[#allocation3 + $0x8] sm:$0xfe]
        %v473 = vld [vmem:[#allocation3 + $0x20] sm:$0x1]
        %v474 = vld [vmem:[#allocation3 + $0x28] sm:$0x1]
        %s475 = scalar_lea.vmem [#allocation4], 288
        %v476 = vld [vmem:[%s475] sm:$0xff]
        %v477 = vld [vmem:[%s475 + $0x8] sm:$0xff]
        %v478 = vld [vmem:[%s475 + $0x10] sm:$0xff]
        %v479 = vld [vmem:[%s475 + $0x18] sm:$0xff]
        %v480 = vld [vmem:[%s475 + $0x20] sm:$0xff]
        %v481 = vld [vmem:[%s475 + $0x28] sm:$0xff]
        %v482 = vld [vmem:[%s475 + $0x30] sm:$0xff]
        %v483 = vld [vmem:[%s475 + $0x38] sm:$0xff]
        %v484 = vld [vmem:[%s475 + $0x40] sm:$0xff]
        %v485 = vld [vmem:[%s475 + $0x48] sm:$0xff]
        %v486 = vld [vmem:[%s475 + $0x50] sm:$0xff]
        %v487 = vld [vmem:[%s475 + $0x58] sm:$0xff]
        %v488 = vld [vmem:[%s475 + $0x60] sm:$0xff]
        %v489 = vld [vmem:[%s475 + $0x68] sm:$0xff]
        %v490 = vld [vmem:[%s475 + $0x70] sm:$0xff]
        %v491 = vld [vmem:[%s475 + $0x78] sm:$0xff]
        %v492 = vld [vmem:[%s475 + $0x80] sm:$0xff]
        %v493 = vld [vmem:[%s475 + $0x88] sm:$0xff]
        %v494 = vld [vmem:[%s475 + $0x90] sm:$0xff]
        %v495 = vld [vmem:[%s475 + $0x98] sm:$0xff]
        %v496 = vld [vmem:[%s475 + $0xa0] sm:$0xff]
        %v497 = vld [vmem:[%s475 + $0xa8] sm:$0xff]
        %v498 = vld [vmem:[%s475 + $0xb0] sm:$0xff]
        %v499 = vld [vmem:[%s475 + $0xb8] sm:$0xff]
        %v500 = vld [vmem:[%s475 + $0xc0] sm:$0xff]
        %v501 = vld [vmem:[%s475 + $0xc8] sm:$0xff]
        %v502 = vld [vmem:[%s475 + $0xd0] sm:$0xff]
        %v503 = vld [vmem:[%s475 + $0xd8] sm:$0xff]
        %v504 = vld [vmem:[%s475 + $0xe0] sm:$0xff]
        %v505 = vld [vmem:[%s475 + $0xe8] sm:$0xff]
        %v506 = vld [vmem:[%s475 + $0xf0] sm:$0xff]
        %v507 = vld [vmem:[%s475 + $0xf8] sm:$0xff]
        %v508 = vld [vmem:[%s475 + $0x100] sm:$0xff]
        %v509 = vld [vmem:[%s475 + $0x108] sm:$0xff]
        %v510 = vld [vmem:[%s475 + $0x110] sm:$0xff]
        %v511 = vld [vmem:[%s475 + $0x118] sm:$0xff]
        %vm518 = vcmask 1046528
        %v519 = vrot.slane %v471, 1
        %v520 = vrot.slane %v433, 1
        %v521 = vsel %vm518, %v519, %v520
        %v522 = vrot.slane %v472, 1
        %v523 = vrot.slane %v434, 1
        %v524 = vsel %vm518, %v522, %v523
        %v525 = vrot.slane %v473, 1
        %v526 = vsel %vm518, %v520, %v525
        %v527 = vrot.slane %v474, 1
        %v528 = vsel %vm518, %v523, %v527
        %v531 = vsel %vm397, %v524, 0
        %v533 = vsel %vm397, %v528, 0
        %535 = vmatpush.msra.mxu0 %v506
        %536 = vmatpush.msra.mxu0 %v504
        %537 = vmatpush.msra.mxu0 %v502
        %538 = vmatpush.msra.mxu0 %v500
        %539 = vmatpush.msra.mxu0 %v498
        %540 = vmatpush.msra.mxu0 %v496
        %541 = vmatpush.msra.mxu0 %v494
        %542 = vmatpush.msra.mxu0 %v492
        %543 = vmatpush.msra.mxu0 %v490
        %544 = vmatpush.msra.mxu0 %v488
        %545 = vmatpush.msra.mxu0 %v486
        %546 = vmatpush.msra.mxu0 %v484
        %547 = vmatpush.msra.mxu0 %v482
        %548 = vmatpush.msra.mxu0 %v480
        %549 = vmatpush.msra.mxu0 %v478
        %550 = vmatpush.msra.mxu0 %v476
        %551 = vmatmul.f32.gmra.mxu0 %v521
        %v552 = vpop.f32.mrf.mxu0
        %v553 = vadd.f32 0.0, %v552
        %554 = vmatmul.f32.gmra.mxu0 %v526
        %v555 = vpop.f32.mrf.mxu0
        %v556 = vadd.f32 0.0, %v555
        %557 = vdwg.mxu0
        %558 = vmatpush.msra.mxu0 0.0
        %559 = vmatpush.msra.mxu0 0.0
        %560 = vmatpush.msra.mxu0 0.0
        %561 = vmatpush.msra.mxu0 0.0
        %562 = vmatpush.msra.mxu0 0.0
        %563 = vmatpush.msra.mxu0 0.0
        %564 = vmatpush.msra.mxu0 0.0
        %565 = vmatpush.msra.mxu0 0.0
        %566 = vmatpush.msra.mxu0 0.0
        %567 = vmatpush.msra.mxu0 0.0
        %568 = vmatpush.msra.mxu0 0.0
        %569 = vmatpush.msra.mxu0 0.0
        %570 = vmatpush.msra.mxu0 0.0
        %571 = vmatpush.msra.mxu0 0.0
        %572 = vmatpush.msra.mxu0 %v510
        %573 = vmatpush.msra.mxu0 %v508
        %574 = vmatmul.f32.gmra.mxu0 %v531
        %v575 = vpop.f32.mrf.mxu0
        %v576 = vadd.f32 %v553, %v575
        %577 = vmatmul.f32.gmra.mxu0 %v533
        %v578 = vpop.f32.mrf.mxu0
        %v579 = vadd.f32 %v556, %v578
        %580 = vdwg.mxu0
        %581 = vmatpush.msra.mxu0 %v507
        %582 = vmatpush.msra.mxu0 %v505
        %583 = vmatpush.msra.mxu0 %v503
        %584 = vmatpush.msra.mxu0 %v501
        %585 = vmatpush.msra.mxu0 %v499
        %586 = vmatpush.msra.mxu0 %v497
        %587 = vmatpush.msra.mxu0 %v495
        %588 = vmatpush.msra.mxu0 %v493
        %589 = vmatpush.msra.mxu0 %v491
        %590 = vmatpush.msra.mxu0 %v489
        %591 = vmatpush.msra.mxu0 %v487
        %592 = vmatpush.msra.mxu0 %v485
        %593 = vmatpush.msra.mxu0 %v483
        %594 = vmatpush.msra.mxu0 %v481
        %595 = vmatpush.msra.mxu0 %v479
        %596 = vmatpush.msra.mxu0 %v477
        %597 = vmatmul.f32.gmra.mxu0 %v521
        %v598 = vpop.f32.mrf.mxu0
        %v599 = vadd.f32 0.0, %v598
        %600 = vmatmul.f32.gmra.mxu0 %v526
        %v601 = vpop.f32.mrf.mxu0
        %v602 = vadd.f32 0.0, %v601
        %603 = vdwg.mxu0
        %604 = vmatpush.msra.mxu0 0.0
        %605 = vmatpush.msra.mxu0 0.0
        %606 = vmatpush.msra.mxu0 0.0
        %607 = vmatpush.msra.mxu0 0.0
        %608 = vmatpush.msra.mxu0 0.0
        %609 = vmatpush.msra.mxu0 0.0
        %610 = vmatpush.msra.mxu0 0.0
        %611 = vmatpush.msra.mxu0 0.0
        %612 = vmatpush.msra.mxu0 0.0
        %613 = vmatpush.msra.mxu0 0.0
        %614 = vmatpush.msra.mxu0 0.0
        %615 = vmatpush.msra.mxu0 0.0
        %616 = vmatpush.msra.mxu0 0.0
        %617 = vmatpush.msra.mxu0 0.0
        %618 = vmatpush.msra.mxu0 %v511
        %619 = vmatpush.msra.mxu0 %v509
        %620 = vmatmul.f32.gmra.mxu0 %v531
        %v621 = vpop.f32.mrf.mxu0
        %v622 = vadd.f32 %v599, %v621
        %623 = vmatmul.f32.gmra.mxu0 %v533
        %v624 = vpop.f32.mrf.mxu0
        %v625 = vadd.f32 %v602, %v624
        %626 = vdwg.mxu0
        %v628 = vsel %vm397, %v432, 0
        %v630 = vsel %vm397, %v434, 0
        %632 = vmatpush.msra.mxu0 %v465
        %633 = vmatpush.msra.mxu0 %v463
        %634 = vmatpush.msra.mxu0 %v461
        %635 = vmatpush.msra.mxu0 %v459
        %636 = vmatpush.msra.mxu0 %v457
        %637 = vmatpush.msra.mxu0 %v455
        %638 = vmatpush.msra.mxu0 %v453
        %639 = vmatpush.msra.mxu0 %v451
        %640 = vmatpush.msra.mxu0 %v449
        %641 = vmatpush.msra.mxu0 %v447
        %642 = vmatpush.msra.mxu0 %v445
        %643 = vmatpush.msra.mxu0 %v443
        %644 = vmatpush.msra.mxu0 %v441
        %645 = vmatpush.msra.mxu0 %v439
        %646 = vmatpush.msra.mxu0 %v437
        %647 = vmatpush.msra.mxu0 %v435
        %648 = vmatmul.f32.gmra.mxu0 %v431
        %v649 = vpop.f32.mrf.mxu0
        %v650 = vadd.f32 %v576, %v649
        %651 = vmatmul.f32.gmra.mxu0 %v433
        %v652 = vpop.f32.mrf.mxu0
        %v653 = vadd.f32 %v579, %v652
        %654 = vdwg.mxu0
        %655 = vmatpush.msra.mxu0 0.0
        %656 = vmatpush.msra.mxu0 0.0
        %657 = vmatpush.msra.mxu0 0.0
        %658 = vmatpush.msra.mxu0 0.0
        %659 = vmatpush.msra.mxu0 0.0
        %660 = vmatpush.msra.mxu0 0.0
        %661 = vmatpush.msra.mxu0 0.0
        %662 = vmatpush.msra.mxu0 0.0
        %663 = vmatpush.msra.mxu0 0.0
        %664 = vmatpush.msra.mxu0 0.0
        %665 = vmatpush.msra.mxu0 0.0
        %666 = vmatpush.msra.mxu0 0.0
        %667 = vmatpush.msra.mxu0 0.0
        %668 = vmatpush.msra.mxu0 0.0
        %669 = vmatpush.msra.mxu0 %v469
        %670 = vmatpush.msra.mxu0 %v467
        %671 = vmatmul.f32.gmra.mxu0 %v628
        %v672 = vpop.f32.mrf.mxu0
        %v673 = vadd.f32 %v650, %v672
        %674 = vmatmul.f32.gmra.mxu0 %v630
        %v675 = vpop.f32.mrf.mxu0
        %v676 = vadd.f32 %v653, %v675
        %677 = vdwg.mxu0
        %678 = vmatpush.msra.mxu0 %v466
        %679 = vmatpush.msra.mxu0 %v464
        %680 = vmatpush.msra.mxu0 %v462
        %681 = vmatpush.msra.mxu0 %v460
        %682 = vmatpush.msra.mxu0 %v458
        %683 = vmatpush.msra.mxu0 %v456
        %684 = vmatpush.msra.mxu0 %v454
        %685 = vmatpush.msra.mxu0 %v452
        %686 = vmatpush.msra.mxu0 %v450
        %687 = vmatpush.msra.mxu0 %v448
        %688 = vmatpush.msra.mxu0 %v446
        %689 = vmatpush.msra.mxu0 %v444
        %690 = vmatpush.msra.mxu0 %v442
        %691 = vmatpush.msra.mxu0 %v440
        %692 = vmatpush.msra.mxu0 %v438
        %693 = vmatpush.msra.mxu0 %v436
        %694 = vmatmul.f32.gmra.mxu0 %v431
        %v695 = vpop.f32.mrf.mxu0
        %v696 = vadd.f32 %v622, %v695
        %697 = vmatmul.f32.gmra.mxu0 %v433
        %v698 = vpop.f32.mrf.mxu0
        %v699 = vadd.f32 %v625, %v698
        %700 = vdwg.mxu0
        %701 = vmatpush.msra.mxu0 0.0
        %702 = vmatpush.msra.mxu0 0.0
        %703 = vmatpush.msra.mxu0 0.0
        %704 = vmatpush.msra.mxu0 0.0
        %705 = vmatpush.msra.mxu0 0.0
        %706 = vmatpush.msra.mxu0 0.0
        %707 = vmatpush.msra.mxu0 0.0
        %708 = vmatpush.msra.mxu0 0.0
        %709 = vmatpush.msra.mxu0 0.0
        %710 = vmatpush.msra.mxu0 0.0
        %711 = vmatpush.msra.mxu0 0.0
        %712 = vmatpush.msra.mxu0 0.0
        %713 = vmatpush.msra.mxu0 0.0
        %714 = vmatpush.msra.mxu0 0.0
        %715 = vmatpush.msra.mxu0 %v470
        %716 = vmatpush.msra.mxu0 %v468
        %717 = vmatmul.f32.gmra.mxu0 %v628
        %v718 = vpop.f32.mrf.mxu0
        %v719 = vadd.f32 %v696, %v718
        %720 = vmatmul.f32.gmra.mxu0 %v630
        %v721 = vpop.f32.mrf.mxu0
        %v722 = vadd.f32 %v699, %v721
        %723 = vdwg.mxu0
        %v724 = vld [vmem:[#allocation3] sm:$0xfc]
        %v725 = vld [vmem:[#allocation3 + $0x8] sm:$0xfc]
        %v726 = vld [vmem:[#allocation3 + $0x20] sm:$0x3]
        %v727 = vld [vmem:[#allocation3 + $0x28] sm:$0x3]
        %s728 = scalar_lea.vmem [#allocation4], 576
        %v729 = vld [vmem:[%s728] sm:$0xff]
        %v730 = vld [vmem:[%s728 + $0x8] sm:$0xff]
        %v731 = vld [vmem:[%s728 + $0x10] sm:$0xff]
        %v732 = vld [vmem:[%s728 + $0x18] sm:$0xff]
        %v733 = vld [vmem:[%s728 + $0x20] sm:$0xff]
        %v734 = vld [vmem:[%s728 + $0x28] sm:$0xff]
        %v735 = vld [vmem:[%s728 + $0x30] sm:$0xff]
        %v736 = vld [vmem:[%s728 + $0x38] sm:$0xff]
        %v737 = vld [vmem:[%s728 + $0x40] sm:$0xff]
        %v738 = vld [vmem:[%s728 + $0x48] sm:$0xff]
        %v739 = vld [vmem:[%s728 + $0x50] sm:$0xff]
        %v740 = vld [vmem:[%s728 + $0x58] sm:$0xff]
        %v741 = vld [vmem:[%s728 + $0x60] sm:$0xff]
        %v742 = vld [vmem:[%s728 + $0x68] sm:$0xff]
        %v743 = vld [vmem:[%s728 + $0x70] sm:$0xff]
        %v744 = vld [vmem:[%s728 + $0x78] sm:$0xff]
        %v745 = vld [vmem:[%s728 + $0x80] sm:$0xff]
        %v746 = vld [vmem:[%s728 + $0x88] sm:$0xff]
        %v747 = vld [vmem:[%s728 + $0x90] sm:$0xff]
        %v748 = vld [vmem:[%s728 + $0x98] sm:$0xff]
        %v749 = vld [vmem:[%s728 + $0xa0] sm:$0xff]
        %v750 = vld [vmem:[%s728 + $0xa8] sm:$0xff]
        %v751 = vld [vmem:[%s728 + $0xb0] sm:$0xff]
        %v752 = vld [vmem:[%s728 + $0xb8] sm:$0xff]
        %v753 = vld [vmem:[%s728 + $0xc0] sm:$0xff]
        %v754 = vld [vmem:[%s728 + $0xc8] sm:$0xff]
        %v755 = vld [vmem:[%s728 + $0xd0] sm:$0xff]
        %v756 = vld [vmem:[%s728 + $0xd8] sm:$0xff]
        %v757 = vld [vmem:[%s728 + $0xe0] sm:$0xff]
        %v758 = vld [vmem:[%s728 + $0xe8] sm:$0xff]
        %v759 = vld [vmem:[%s728 + $0xf0] sm:$0xff]
        %v760 = vld [vmem:[%s728 + $0xf8] sm:$0xff]
        %v761 = vld [vmem:[%s728 + $0x100] sm:$0xff]
        %v762 = vld [vmem:[%s728 + $0x108] sm:$0xff]
        %v763 = vld [vmem:[%s728 + $0x110] sm:$0xff]
        %v764 = vld [vmem:[%s728 + $0x118] sm:$0xff]
        %v769 = vrot.slane %v724, 2
        %v770 = vrot.slane %v433, 2
        %v771 = vsel %vm285, %v769, %v770
        %v772 = vrot.slane %v725, 2
        %v773 = vrot.slane %v434, 2
        %v774 = vsel %vm285, %v772, %v773
        %v775 = vrot.slane %v726, 2
        %v776 = vsel %vm285, %v770, %v775
        %v777 = vrot.slane %v727, 2
        %v778 = vsel %vm285, %v773, %v777
        %v781 = vsel %vm397, %v774, 0
        %v783 = vsel %vm397, %v778, 0
        %785 = vmatpush.msra.mxu0 %v759
        %786 = vmatpush.msra.mxu0 %v757
        %787 = vmatpush.msra.mxu0 %v755
        %788 = vmatpush.msra.mxu0 %v753
        %789 = vmatpush.msra.mxu0 %v751
        %790 = vmatpush.msra.mxu0 %v749
        %791 = vmatpush.msra.mxu0 %v747
        %792 = vmatpush.msra.mxu0 %v745
        %793 = vmatpush.msra.mxu0 %v743
        %794 = vmatpush.msra.mxu0 %v741
        %795 = vmatpush.msra.mxu0 %v739
        %796 = vmatpush.msra.mxu0 %v737
        %797 = vmatpush.msra.mxu0 %v735
        %798 = vmatpush.msra.mxu0 %v733
        %799 = vmatpush.msra.mxu0 %v731
        %800 = vmatpush.msra.mxu0 %v729
        %801 = vmatmul.f32.gmra.mxu0 %v771
        %v802 = vpop.f32.mrf.mxu0
        %v803 = vadd.f32 0.0, %v802
        %804 = vmatmul.f32.gmra.mxu0 %v776
        %v805 = vpop.f32.mrf.mxu0
        %v806 = vadd.f32 0.0, %v805
        %807 = vdwg.mxu0
        %808 = vmatpush.msra.mxu0 0.0
        %809 = vmatpush.msra.mxu0 0.0
        %810 = vmatpush.msra.mxu0 0.0
        %811 = vmatpush.msra.mxu0 0.0
        %812 = vmatpush.msra.mxu0 0.0
        %813 = vmatpush.msra.mxu0 0.0
        %814 = vmatpush.msra.mxu0 0.0
        %815 = vmatpush.msra.mxu0 0.0
        %816 = vmatpush.msra.mxu0 0.0
        %817 = vmatpush.msra.mxu0 0.0
        %818 = vmatpush.msra.mxu0 0.0
        %819 = vmatpush.msra.mxu0 0.0
        %820 = vmatpush.msra.mxu0 0.0
        %821 = vmatpush.msra.mxu0 0.0
        %822 = vmatpush.msra.mxu0 %v763
        %823 = vmatpush.msra.mxu0 %v761
        %824 = vmatmul.f32.gmra.mxu0 %v781
        %v825 = vpop.f32.mrf.mxu0
        %v826 = vadd.f32 %v803, %v825
        %827 = vmatmul.f32.gmra.mxu0 %v783
        %v828 = vpop.f32.mrf.mxu0
        %v829 = vadd.f32 %v806, %v828
        %830 = vdwg.mxu0
        %831 = vmatpush.msra.mxu0 %v760
        %832 = vmatpush.msra.mxu0 %v758
        %833 = vmatpush.msra.mxu0 %v756
        %834 = vmatpush.msra.mxu0 %v754
        %835 = vmatpush.msra.mxu0 %v752
        %836 = vmatpush.msra.mxu0 %v750
        %837 = vmatpush.msra.mxu0 %v748
        %838 = vmatpush.msra.mxu0 %v746
        %839 = vmatpush.msra.mxu0 %v744
        %840 = vmatpush.msra.mxu0 %v742
        %841 = vmatpush.msra.mxu0 %v740
        %842 = vmatpush.msra.mxu0 %v738
        %843 = vmatpush.msra.mxu0 %v736
        %844 = vmatpush.msra.mxu0 %v734
        %845 = vmatpush.msra.mxu0 %v732
        %846 = vmatpush.msra.mxu0 %v730
        %847 = vmatmul.f32.gmra.mxu0 %v771
        %v848 = vpop.f32.mrf.mxu0
        %v849 = vadd.f32 0.0, %v848
        %850 = vmatmul.f32.gmra.mxu0 %v776
        %v851 = vpop.f32.mrf.mxu0
        %v852 = vadd.f32 0.0, %v851
        %853 = vdwg.mxu0
        %854 = vmatpush.msra.mxu0 0.0
        %855 = vmatpush.msra.mxu0 0.0
        %856 = vmatpush.msra.mxu0 0.0
        %857 = vmatpush.msra.mxu0 0.0
        %858 = vmatpush.msra.mxu0 0.0
        %859 = vmatpush.msra.mxu0 0.0
        %860 = vmatpush.msra.mxu0 0.0
        %861 = vmatpush.msra.mxu0 0.0
        %862 = vmatpush.msra.mxu0 0.0
        %863 = vmatpush.msra.mxu0 0.0
        %864 = vmatpush.msra.mxu0 0.0
        %865 = vmatpush.msra.mxu0 0.0
        %866 = vmatpush.msra.mxu0 0.0
        %867 = vmatpush.msra.mxu0 0.0
        %868 = vmatpush.msra.mxu0 %v764
        %869 = vmatpush.msra.mxu0 %v762
        %870 = vmatmul.f32.gmra.mxu0 %v781
        %v871 = vpop.f32.mrf.mxu0
        %v872 = vadd.f32 %v849, %v871
        %873 = vmatmul.f32.gmra.mxu0 %v783
        %v874 = vpop.f32.mrf.mxu0
        %v875 = vadd.f32 %v852, %v874
        %876 = vdwg.mxu0
        %v877 = vadd.f32 %v673, %v826
        %v878 = vadd.f32 %v719, %v872
        %v879 = vadd.f32 %v676, %v829
        %v880 = vadd.f32 %v722, %v875
        %v881 = vld [vmem:[%s4] sm:$0x3]
        %v883 = vperm.slane %v881, 0
        %v884 = vperm.slane %v881, 1
        %v887 = vadd.f32 %v877, %v883
        %v888 = vadd.f32 %v878, %v884
        %v889 = vadd.f32 %v879, %v883
        %v890 = vadd.f32 %v880, %v884
        %v891 = vmax.f32 %v887, 0.0
        %v892 = vmax.f32 %v888, 0.0
        %v893 = vmax.f32 %v889, 0.0
        %v894 = vmax.f32 %v890, 0.0
        %895 = vst [vmem:[%s241] sm:$0xff] %v891
        %896 = vst [vmem:[%s241 + $0x8] sm:$0xff] %v892
        %897 = vst [vmem:[%s241 + $0x10] sm:$0xff] %v893
        %898 = vst [vmem:[%s241 + $0x18] sm:$0xff] %v894
        %p899 = scmp.lt.s32.totalorder %s17, 1
        %s900 = scalar_select %p899, %s17, 1
        %s901 = smul.addr %s900, 4
        %s902 = smul.addr %s901, 8
        %s903 = scalar_lea.vmem %s5, %s902
        // Predicated region
        $region45: #{_encoder_forward.1} parent=39 // pred_check
          %p904 = pneg %p145
        $region46: #{_encoder_forward.1} parent=39 // pred_check_branch
          %906 = sbr.rel (%p904) target = $region48
        $region47: #{_encoder_forward.1} parent=39 // pred_region
          _
        $region48: #{_encoder_forward.1} parent=39 // pred_fallthru
          _
      $region40: #{_encoder_forward.1} parent=5 // pred_fallthru
        _
      %p907 = scmp.le.s32.totalorder 2, %s12
      // Predicated region
      $region49: #{_encoder_forward.1} parent=5 // pred_check
        %p908 = pneg %p907
      $region50: #{_encoder_forward.1} parent=5 // pred_check_branch
        %910 = sbr.rel (%p908) target = $region52
      $region51: #{_encoder_forward.1} parent=5 // pred_region
        %s911 = ssub.s32 %s12, 2
        // Predicated region
        $region53: #{_encoder_forward.1} parent=51 // pred_check
          %p912 = pneg %p151
        $region54: #{_encoder_forward.1} parent=51 // pred_check_branch
          %914 = sbr.rel (%p912) target = $region56
        $region55: #{_encoder_forward.1} parent=51 // pred_region
          %p915 = scmp.lt.s32.totalorder %s18, 1
          %s916 = scalar_select %p915, %s18, 1
          %s917 = smul.addr %s916, 4
          %s918 = smul.addr %s917, 8
          %s919 = scalar_lea.vmem %s5, %s918
        $region56: #{_encoder_forward.1} parent=51 // pred_fallthru
          _
      $region52: #{_encoder_forward.1} parent=5 // pred_fallthru
        _
    $region6: #{_encoder_forward.1} parent=1 // loop_footer
      %s16 = sadd.s32 1, %s12
    $region7: #{_encoder_forward.1} parent=1 // loop_footer_branch
      %11 = sbr.rel target = $region3
    $region8: #{_encoder_forward.1} parent=1 // loop_exit
      _
    %920 = vsyncpa [#allocation5], 1
    %s921 = scalar_lea.sflag [#allocation5], 1
    %922 = vsyncpa %s921, 1

</llo_original>
